<compile_context>
chip_gen: v6e
topology: v6e:2x2x1
jax: 0.10.0
libtpu: 0.0.40
codegen_flags: <defaults>
</compile_context>

<pallas_src>
import functools
import numpy as np
import jax
import jax.numpy as jnp
from jax.experimental import pallas as pl
from jax.experimental.pallas import tpu as pltpu  # noqa: F401  (TPU backend)

# ---------------- model config (small synthetic sizes) ----------------
B = 2            # batch
S = 8            # seq_len
D = 32           # input_dim
H = 32           # hidden_dim
FCN = 32         # fcn_dim
C = 16           # n_classes
M = 2            # num_mixtures
EPS = 1e-5


# =======================================================================
# Fused kernel: encoder (Linear+ReLU) -> AvgMax pool over seq ->
# intermediate FC (BN folded) -> ONE fused head dot (gates + experts) ->
# per-class softmax over mixtures -> mixture-weighted sum -> lane-dense store.
# Single ungridded call: everything stays in VMEM / registers.
# =======================================================================
def fused_gated_dbof_kernel(x_ref, we_ref, be_ref, wi_ref, bi_ref,
                            wh_ref, bh_ref, out_ref, *,
                            batch, seq, n_cls, n_mix, out_rows, out_lanes):
    # encoder: one (B*S, D) @ (D, H) matmul + bias + ReLU
    h = jnp.maximum(
        jnp.dot(x_ref[...], we_ref[...], preferred_element_type=jnp.float32)
        + be_ref[...], 0.0)                                     # (B*S, H)

    # AvgMax pooling over the sequence axis: S == 8 rows per batch element is
    # exactly one sublane group, so the reshape is tile-aligned and the
    # reductions are sublane-group reduces (no per-batch loop / concats).
    h3 = h.reshape(batch, seq, h.shape[-1])                     # (B, S, H)
    mx = jnp.max(h3, axis=1)                                    # (B, H)
    av = jnp.mean(h3, axis=1)                                   # (B, H)
    pooled = jnp.concatenate([mx, av], axis=-1)                 # (B, 2H) [max|avg]

    # intermediate_fc: BN1 folded into wi/bi offline
    hidden = jnp.maximum(
        jnp.dot(pooled, wi_ref[...], preferred_element_type=jnp.float32)
        + bi_ref[...], 0.0)                                     # (B, FCN)

    # ONE fused head dot: columns = [gate_0 .. gate_M | exp_0 .. exp_{M-1}]
    head = (jnp.dot(hidden, wh_ref[...], preferred_element_type=jnp.float32)
            + bh_ref[...])                                      # (B, (2M+1)*C)

    gates = [head[:, j * n_cls:(j + 1) * n_cls] for j in range(n_mix + 1)]
    e_off = (n_mix + 1) * n_cls
    experts = [head[:, e_off + m * n_cls: e_off + (m + 1) * n_cls]
               for m in range(n_mix)]

    # per-class softmax over the M+1 gate slabs
    gmax = gates[0]
    for g in gates[1:]:
        gmax = jnp.maximum(gmax, g)
    gexp = [jnp.exp(g - gmax) for g in gates]
    gsum = gexp[0]
    for g in gexp[1:]:
        gsum = gsum + g
    inv = pl.reciprocal(gsum, approx=True)                      # EUP slot

    # mixture-weighted sum of the expert slabs
    acc = experts[0] * (gexp[0] * inv)
    for m in range(1, n_mix):
        acc = acc + experts[m] * (gexp[m] * inv)                # (B, C)

    # lane-dense output store: pad (B, C) -> (out_rows, out_lanes) once
    if n_cls < out_lanes:
        acc = jnp.concatenate(
            [acc, jnp.zeros((batch, out_lanes - n_cls), jnp.float32)], axis=-1)
    if batch < out_rows:
        acc = jnp.concatenate(
            [acc, jnp.zeros((out_rows - batch, out_lanes), jnp.float32)], axis=0)
    out_ref[...] = acc


@jax.jit
def gated_dbof_forward(x, pp):
    b, s, d = x.shape
    n_cls, n_mix = C, M
    out_rows = ((max(b, 1) + 7) // 8) * 8
    out_lanes = ((max(n_cls, 1) + 127) // 128) * 128
    kernel = functools.partial(
        fused_gated_dbof_kernel, batch=b, seq=s, n_cls=n_cls, n_mix=n_mix,
        out_rows=out_rows, out_lanes=out_lanes)
    out_padded = pl.pallas_call(
        kernel,
        out_shape=jax.ShapeDtypeStruct((out_rows, out_lanes), jnp.float32),
    )(x.reshape(b * s, d),
      pp["w_enc"], pp["b_enc"],
      pp["w_int"], pp["b_int"],
      pp["w_head"], pp["b_head"])
    return out_padded[:b, :n_cls]


# =======================================================================
# Parameter construction (deterministic) + one-time offline folding/packing
# =======================================================================
def bn_fold(gamma, beta, mean, var):
    scale = gamma / jnp.sqrt(var + EPS)
    shift = beta - mean * scale
    return scale, shift


def make_params(key):
    ks = jax.random.split(key, 16)
    p = {}
    p["w_enc"] = 0.05 * jax.random.normal(ks[0], (D, H), jnp.float32)
    p["b_enc"] = 0.05 * jax.random.normal(ks[1], (H,), jnp.float32)
    # BN over pooled (2H)
    p["bn1"] = (1.0 + 0.1 * jax.random.normal(ks[2], (2 * H,), jnp.float32),
                0.1 * jax.random.normal(ks[3], (2 * H,), jnp.float32),
                0.1 * jax.random.normal(ks[4], (2 * H,), jnp.float32),
                1.0 + 0.1 * jnp.abs(jax.random.normal(ks[5], (2 * H,), jnp.float32)))
    p["w_int"] = 0.05 * jax.random.normal(ks[6], (2 * H, FCN), jnp.float32)  # no bias
    # BN for expert branch (FCN)
    p["bn2"] = (1.0 + 0.1 * jax.random.normal(ks[7], (FCN,), jnp.float32),
                0.1 * jax.random.normal(ks[8], (FCN,), jnp.float32),
                0.1 * jax.random.normal(ks[9], (FCN,), jnp.float32),
                1.0 + 0.1 * jnp.abs(jax.random.normal(ks[10], (FCN,), jnp.float32)))
    p["w_exp"] = 0.05 * jax.random.normal(ks[11], (FCN, C * M), jnp.float32)
    p["b_exp"] = 0.05 * jax.random.normal(ks[12], (C * M,), jnp.float32)
    # BN for gating branch (FCN)
    p["bn3"] = (1.0 + 0.1 * jax.random.normal(ks[13], (FCN,), jnp.float32),
                0.1 * jax.random.normal(ks[14], (FCN,), jnp.float32),
                0.1 * jax.random.normal(ks[15], (FCN,), jnp.float32),
                jnp.ones((FCN,), jnp.float32))
    p["w_gate"] = 0.05 * jax.random.normal(jax.random.fold_in(key, 99),
                                           (FCN, C * (M + 1)), jnp.float32)
    p["b_gate"] = 0.05 * jax.random.normal(jax.random.fold_in(key, 100),
                                           (C * (M + 1),), jnp.float32)
    return p


def prepare_params(p):
    """One-time offline fold + pack:
      * eval-mode BatchNorms folded into the downstream weight matrices/biases,
      * expert + gating matrices repacked (torch flat column = class*n_mix + mix)
        into ONE lane-dense head  W_head (FCN, (2M+1)*C):
        columns = [gate_0 .. gate_M | exp_0 .. exp_{M-1}], plus a (1, .) bias row.
    """
    s1, t1 = bn_fold(*p["bn1"])
    s2, t2 = bn_fold(*p["bn2"])
    s3, t3 = bn_fold(*p["bn3"])

    w_int_f = p["w_int"] * s1[:, None]                          # (2H, FCN)
    b_int_f = (t1 @ p["w_int"]).reshape(1, FCN)

    w_exp_f = p["w_exp"] * s2[:, None]                          # (FCN, C*M)
    b_exp_f = p["b_exp"] + t2 @ p["w_exp"]                      # (C*M,)
    w_gate_f = p["w_gate"] * s3[:, None]                        # (FCN, C*(M+1))
    b_gate_f = p["b_gate"] + t3 @ p["w_gate"]                   # (C*(M+1),)

    w_gate_slabs = [w_gate_f.reshape(FCN, C, M + 1)[:, :, j] for j in range(M + 1)]
    b_gate_slabs = [b_gate_f.reshape(C, M + 1)[:, j] for j in range(M + 1)]
    w_exp_slabs = [w_exp_f.reshape(FCN, C, M)[:, :, m] for m in range(M)]
    b_exp_slabs = [b_exp_f.reshape(C, M)[:, m] for m in range(M)]

    w_head = jnp.concatenate(w_gate_slabs + w_exp_slabs, axis=1)       # (FCN, (2M+1)*C)
    b_head = jnp.concatenate(b_gate_slabs + b_exp_slabs, axis=0).reshape(1, -1)

    return {
        "w_enc": p["w_enc"], "b_enc": p["b_enc"].reshape(1, H),
        "w_int": w_int_f, "b_int": b_int_f,
        "w_head": w_head, "b_head": b_head,
    }


# =======================================================================
# Pure-JAX replica of the PyTorch eval-mode forward (for validation)
# =======================================================================
def reference_forward(x, p):
    h = jnp.maximum(jnp.einsum("bsd,dh->bsh", x, p["w_enc"]) + p["b_enc"], 0.0)
    enc = jnp.transpose(h, (0, 2, 1))                           # (B, H, S)
    pooled = jnp.concatenate([enc.max(axis=2), enc.mean(axis=2)], axis=1)

    def bn(v, stats):
        g, b, m, var = stats
        return g * (v - m) / jnp.sqrt(var + EPS) + b

    hidden = jnp.maximum(bn(pooled, p["bn1"]) @ p["w_int"], 0.0)
    expert = (bn(hidden, p["bn2"]) @ p["w_exp"] + p["b_exp"]).reshape(-1, C, M)
    gate = (bn(hidden, p["bn3"]) @ p["w_gate"] + p["b_gate"]).reshape(-1, C, M + 1)
    gate = jax.nn.softmax(gate, axis=-1)
    return (expert * gate[..., :M]).sum(axis=-1)


if __name__ == "__main__":
    key = jax.random.PRNGKey(0)
    kx, kp = jax.random.split(key)
    x = jax.random.normal(kx, (B, S, D), jnp.float32)
    params = make_params(kp)
    prepped = jax.block_until_ready(prepare_params(params))     # one-time fold/pack

    out = jax.block_until_ready(gated_dbof_forward(x, prepped))
    ref = jax.block_until_ready(reference_forward(x, params))

    assert out.shape == (B, C), out.shape
    np.testing.assert_allclose(np.asarray(out), np.asarray(ref),
                               rtol=1e-3, atol=1e-3)
    print("KERNEL_OK")
</pallas_src>

<mosaic_0001>
module attributes {stable_mosaic.version = 11 : i64} {
  func.func @fused_gated_dbof_kernel(%arg0: memref<16x32xf32, #tpu.memory_space<vmem>>, %arg1: memref<32x32xf32, #tpu.memory_space<vmem>>, %arg2: memref<1x32xf32, #tpu.memory_space<vmem>>, %arg3: memref<64x32xf32, #tpu.memory_space<vmem>>, %arg4: memref<1x32xf32, #tpu.memory_space<vmem>>, %arg5: memref<32x80xf32, #tpu.memory_space<vmem>>, %arg6: memref<1x80xf32, #tpu.memory_space<vmem>>, %arg7: memref<8x128xf32, #tpu.memory_space<vmem>>) attributes {dimension_semantics = [], scalar_prefetch = 0 : i64, scratch_operands = 0 : i64, tpu.core_type = #tpu.core_type<tc>} {
    %c0 = arith.constant 0 : index
    %c0_0 = arith.constant 0 : index
    %0 = vector.load %arg0[%c0, %c0_0] : memref<16x32xf32, #tpu.memory_space<vmem>>, vector<16x32xf32>
    %c0_1 = arith.constant 0 : index
    %c0_2 = arith.constant 0 : index
    %1 = vector.load %arg1[%c0_1, %c0_2] : memref<32x32xf32, #tpu.memory_space<vmem>>, vector<32x32xf32>
    %cst = arith.constant dense<0.000000e+00> : vector<16x32xf32>
    %2 = tpu.matmul %0, %1, %cst {dimension_numbers = #tpu.dot_dimension_numbers<[1], [0], [0], [1], [0, 0, 1, 1], [], []>} : vector<16x32xf32>, vector<32x32xf32>, vector<16x32xf32> -> vector<16x32xf32>
    %c0_3 = arith.constant 0 : index
    %c0_4 = arith.constant 0 : index
    %3 = vector.load %arg2[%c0_3, %c0_4] : memref<1x32xf32, #tpu.memory_space<vmem>>, vector<1x32xf32>
    %4 = vector.broadcast %3 : vector<1x32xf32> to vector<16x32xf32>
    %5 = arith.addf %2, %4 : vector<16x32xf32>
    %cst_5 = arith.constant 0.000000e+00 : f32
    %6 = vector.broadcast %cst_5 : f32 to vector<16x32xf32>
    %7 = arith.maximumf %5, %6 : vector<16x32xf32>
    %8 = vector.shape_cast %7 : vector<16x32xf32> to vector<2x8x32xf32>
    %cst_6 = arith.constant dense<0xFF800000> : vector<2x32xf32>
    %9 = vector.multi_reduction <maximumf>, %8, %cst_6 [1] : vector<2x8x32xf32> to vector<2x32xf32>
    %cst_7 = arith.constant dense<0.000000e+00> : vector<2x32xf32>
    %10 = vector.multi_reduction <add>, %8, %cst_7 [1] : vector<2x8x32xf32> to vector<2x32xf32>
    %cst_8 = arith.constant 8.000000e+00 : f32
    %11 = vector.broadcast %cst_8 : f32 to vector<2x32xf32>
    %12 = arith.divf %10, %11 : vector<2x32xf32>
    %13 = tpu.concatenate %9, %12 in 1 : vector<2x32xf32>, vector<2x32xf32> -> vector<2x64xf32>
    %c0_9 = arith.constant 0 : index
    %c0_10 = arith.constant 0 : index
    %14 = vector.load %arg3[%c0_9, %c0_10] : memref<64x32xf32, #tpu.memory_space<vmem>>, vector<64x32xf32>
    %cst_11 = arith.constant dense<0.000000e+00> : vector<2x32xf32>
    %15 = tpu.matmul %13, %14, %cst_11 {dimension_numbers = #tpu.dot_dimension_numbers<[1], [0], [0], [1], [0, 0, 1, 1], [], []>} : vector<2x64xf32>, vector<64x32xf32>, vector<2x32xf32> -> vector<2x32xf32>
    %c0_12 = arith.constant 0 : index
    %c0_13 = arith.constant 0 : index
    %16 = vector.load %arg4[%c0_12, %c0_13] : memref<1x32xf32, #tpu.memory_space<vmem>>, vector<1x32xf32>
    %17 = vector.broadcast %16 : vector<1x32xf32> to vector<2x32xf32>
    %18 = arith.addf %15, %17 : vector<2x32xf32>
    %cst_14 = arith.constant 0.000000e+00 : f32
    %19 = vector.broadcast %cst_14 : f32 to vector<2x32xf32>
    %20 = arith.maximumf %18, %19 : vector<2x32xf32>
    %c0_15 = arith.constant 0 : index
    %c0_16 = arith.constant 0 : index
    %21 = vector.load %arg5[%c0_15, %c0_16] : memref<32x80xf32, #tpu.memory_space<vmem>>, vector<32x80xf32>
    %cst_17 = arith.constant dense<0.000000e+00> : vector<2x80xf32>
    %22 = tpu.matmul %20, %21, %cst_17 {dimension_numbers = #tpu.dot_dimension_numbers<[1], [0], [0], [1], [0, 0, 1, 1], [], []>} : vector<2x32xf32>, vector<32x80xf32>, vector<2x80xf32> -> vector<2x80xf32>
    %c0_18 = arith.constant 0 : index
    %c0_19 = arith.constant 0 : index
    %23 = vector.load %arg6[%c0_18, %c0_19] : memref<1x80xf32, #tpu.memory_space<vmem>>, vector<1x80xf32>
    %24 = vector.broadcast %23 : vector<1x80xf32> to vector<2x80xf32>
    %25 = arith.addf %22, %24 : vector<2x80xf32>
    %26 = vector.extract_strided_slice %25 {offsets = [0, 0], sizes = [2, 16], strides = [1, 1]} : vector<2x80xf32> to vector<2x16xf32>
    %27 = vector.extract_strided_slice %25 {offsets = [0, 16], sizes = [2, 16], strides = [1, 1]} : vector<2x80xf32> to vector<2x16xf32>
    %28 = vector.extract_strided_slice %25 {offsets = [0, 32], sizes = [2, 16], strides = [1, 1]} : vector<2x80xf32> to vector<2x16xf32>
    %29 = vector.extract_strided_slice %25 {offsets = [0, 48], sizes = [2, 16], strides = [1, 1]} : vector<2x80xf32> to vector<2x16xf32>
    %30 = vector.extract_strided_slice %25 {offsets = [0, 64], sizes = [2, 16], strides = [1, 1]} : vector<2x80xf32> to vector<2x16xf32>
    %31 = arith.maximumf %26, %27 : vector<2x16xf32>
    %32 = arith.maximumf %31, %28 : vector<2x16xf32>
    %33 = arith.subf %26, %32 : vector<2x16xf32>
    %34 = math.exp %33 : vector<2x16xf32>
    %35 = arith.subf %27, %32 : vector<2x16xf32>
    %36 = math.exp %35 : vector<2x16xf32>
    %37 = arith.subf %28, %32 : vector<2x16xf32>
    %38 = math.exp %37 : vector<2x16xf32>
    %39 = arith.addf %34, %36 : vector<2x16xf32>
    %40 = arith.addf %39, %38 : vector<2x16xf32>
    %41 = tpu.reciprocal %40 {approx = true} : vector<2x16xf32> -> vector<2x16xf32>
    %42 = arith.mulf %34, %41 : vector<2x16xf32>
    %43 = arith.mulf %29, %42 : vector<2x16xf32>
    %44 = arith.mulf %36, %41 : vector<2x16xf32>
    %45 = arith.mulf %30, %44 : vector<2x16xf32>
    %46 = arith.addf %43, %45 : vector<2x16xf32>
    %cst_20 = arith.constant 0.000000e+00 : f32
    %47 = vector.broadcast %cst_20 : f32 to vector<2x112xf32>
    %48 = tpu.concatenate %46, %47 in 1 : vector<2x16xf32>, vector<2x112xf32> -> vector<2x128xf32>
    %cst_21 = arith.constant 0.000000e+00 : f32
    %49 = vector.broadcast %cst_21 : f32 to vector<6x128xf32>
    %50 = tpu.concatenate %48, %49 in 0 : vector<2x128xf32>, vector<6x128xf32> -> vector<8x128xf32>
    %c0_22 = arith.constant 0 : index
    %c0_23 = arith.constant 0 : index
    %51 = vector.load %arg7[%c0_22, %c0_23] : memref<8x128xf32, #tpu.memory_space<vmem>>, vector<8x128xf32>
    tpu.vector_store %arg7[%c0_22, %c0_23], %50 {strides = array<i32>} : memref<8x128xf32, #tpu.memory_space<vmem>>, vector<8x128xf32>,
    return
  }
}

</mosaic_0001>

<llo_original>
// kernel: gated_dbof_forward.1
$region0: #{gated_dbof_forward.1}
  #allocation0 [shape = 'u32[]', space=smem, size = 0x4, offset = 0x4, fixed_abs, tag = 'smem constant byte address 0x4 - core index']
  #allocation1 [shape = 'u32[144,128]{1,0:T(1,128)}', space=vmem, size = 0x12000, scoped, tag = 'internal scratch']
  %s0 = inlined_call_operand.vmem [shape: f32[16,32], index: 0, kind: input, shape index: {}]
  %s1 = inlined_call_operand.vmem [shape: f32[32,32], index: 1, kind: input, shape index: {}]
  %s2 = inlined_call_operand.vmem [shape: f32[1,32], index: 2, kind: input, shape index: {}]
  %s3 = inlined_call_operand.vmem [shape: f32[64,32], index: 3, kind: input, shape index: {}]
  %s4 = inlined_call_operand.vmem [shape: f32[1,32], index: 4, kind: input, shape index: {}]
  %s5 = inlined_call_operand.vmem [shape: f32[32,80], index: 5, kind: input, shape index: {}]
  %s6 = inlined_call_operand.vmem [shape: f32[1,80], index: 6, kind: input, shape index: {}]
  %s7 = inlined_call_operand.vmem [shape: f32[8,128], index: 7, kind: output, shape index: {}]
  %s8 = sld [smem:[#allocation0]]
  $region38: #{gated_dbof_forward.1} parent=0
    _
  %s10 = ssub.s32 1, %s8
  %s11 = scalar_select 0, %s10, %s8
  // Predicated region
  $region2: #{gated_dbof_forward.1} parent=0 // pred_check
    _
  $region3: #{gated_dbof_forward.1} parent=0 // pred_check_branch
    %13 = sbr.rel (0) target = $region5
  $region4: #{gated_dbof_forward.1} parent=0 // pred_region
    _
  $region5: #{gated_dbof_forward.1} parent=0 // pred_fallthru
    _
  // Predicated region
  $region6: #{gated_dbof_forward.1} parent=0 // pred_check
    _
  $region7: #{gated_dbof_forward.1} parent=0 // pred_check_branch
    %15 = sbr.rel (0) target = $region9
  $region8: #{gated_dbof_forward.1} parent=0 // pred_region
    _
  $region9: #{gated_dbof_forward.1} parent=0 // pred_fallthru
    _
  // Predicated region
  $region10: #{gated_dbof_forward.1} parent=0 // pred_check
    _
  $region11: #{gated_dbof_forward.1} parent=0 // pred_check_branch
    %17 = sbr.rel (0) target = $region13
  $region12: #{gated_dbof_forward.1} parent=0 // pred_region
    _
  $region13: #{gated_dbof_forward.1} parent=0 // pred_fallthru
    _
  // Predicated region
  $region14: #{gated_dbof_forward.1} parent=0 // pred_check
    _
  $region15: #{gated_dbof_forward.1} parent=0 // pred_check_branch
    %19 = sbr.rel (0) target = $region17
  $region16: #{gated_dbof_forward.1} parent=0 // pred_region
    _
  $region17: #{gated_dbof_forward.1} parent=0 // pred_fallthru
    _
  // Predicated region
  $region18: #{gated_dbof_forward.1} parent=0 // pred_check
    _
  $region19: #{gated_dbof_forward.1} parent=0 // pred_check_branch
    %21 = sbr.rel (0) target = $region21
  $region20: #{gated_dbof_forward.1} parent=0 // pred_region
    _
  $region21: #{gated_dbof_forward.1} parent=0 // pred_fallthru
    _
  // Predicated region
  $region22: #{gated_dbof_forward.1} parent=0 // pred_check
    _
  $region23: #{gated_dbof_forward.1} parent=0 // pred_check_branch
    %23 = sbr.rel (0) target = $region25
  $region24: #{gated_dbof_forward.1} parent=0 // pred_region
    _
  $region25: #{gated_dbof_forward.1} parent=0 // pred_fallthru
    _
  // Predicated region
  $region26: #{gated_dbof_forward.1} parent=0 // pred_check
    _
  $region27: #{gated_dbof_forward.1} parent=0 // pred_check_branch
    %25 = sbr.rel (0) target = $region29
  $region28: #{gated_dbof_forward.1} parent=0 // pred_region
    _
  $region29: #{gated_dbof_forward.1} parent=0 // pred_fallthru
    _
  %v26 = vld [vmem:[%s0] sm:$0xff]
  %v27 = vld [vmem:[%s0 + $0x8] sm:$0xff]
  %v28 = vld [vmem:[%s1] sm:$0xff]
  %v29 = vld [vmem:[%s1 + $0x8] sm:$0xff]
  %v30 = vld [vmem:[%s1 + $0x10] sm:$0xff]
  %v31 = vld [vmem:[%s1 + $0x18] sm:$0xff]
  %v32 = vld [vmem:[%s2] sm:$0x1]
  %v34 = vlaneseq
  %v35 = vshrl.u32 %v34, 7
  %v36 = vsub.s32 0, %v35
  %v37 = vrot.slane %v32, %v36
  %vm39 = vcmask 261120
  %v41 = vsel %vm39, %v26, 0
  %v44 = vsel %vm39, %v27, 0
  %46 = vmatprep.subr.mxu0 0.0
  %47 = vmatpush1.msra.mxu0 0.0
  %48 = vmatprep.subr.mxu0 0.0
  %49 = vmatpush1.msra.mxu0 0.0
  %50 = vmatprep.subr.mxu0 0.0
  %51 = vmatpush1.msra.mxu0 0.0
  %52 = vmatprep.subr.mxu0 0.0
  %53 = vmatpush1.msra.mxu0 0.0
  %54 = vmatprep.subr.mxu0 0.0
  %55 = vmatpush1.msra.mxu0 0.0
  %56 = vmatprep.subr.mxu0 0.0
  %57 = vmatpush1.msra.mxu0 0.0
  %58 = vmatprep.subr.mxu0 0.0
  %59 = vmatpush1.msra.mxu0 0.0
  %60 = vmatprep.subr.mxu0 0.0
  %61 = vmatpush1.msra.mxu0 0.0
  %62 = vmatprep.subr.mxu0 0.0
  %63 = vmatpush1.msra.mxu0 0.0
  %64 = vmatprep.subr.mxu0 0.0
  %65 = vmatpush1.msra.mxu0 0.0
  %66 = vmatprep.subr.mxu0 0.0
  %67 = vmatpush1.msra.mxu0 0.0
  %68 = vmatprep.subr.mxu0 0.0
  %69 = vmatpush1.msra.mxu0 0.0
  %70 = vmatprep.subr.mxu0 0.0
  %71 = vmatpush1.msra.mxu0 %v31
  %72 = vmatprep.subr.mxu0 0.0
  %73 = vmatpush1.msra.mxu0 %v30
  %74 = vmatprep.subr.mxu0 0.0
  %75 = vmatpush1.msra.mxu0 %v29
  %76 = vmatprep.subr.mxu0 0.0
  %77 = vmatpush1.msra.mxu0 %v28
  %78 = vmatprep.subr.mxu0 0.0
  %79 = vmatpush2.msra.mxu0 0.0
  %80 = vmatprep.subr.mxu0 0.0
  %81 = vmatpush2.msra.mxu0 0.0
  %82 = vmatprep.subr.mxu0 0.0
  %83 = vmatpush2.msra.mxu0 0.0
  %84 = vmatprep.subr.mxu0 0.0
  %85 = vmatpush2.msra.mxu0 0.0
  %86 = vmatprep.subr.mxu0 0.0
  %87 = vmatpush2.msra.mxu0 0.0
  %88 = vmatprep.subr.mxu0 0.0
  %89 = vmatpush2.msra.mxu0 0.0
  %90 = vmatprep.subr.mxu0 0.0
  %91 = vmatpush2.msra.mxu0 0.0
  %92 = vmatprep.subr.mxu0 0.0
  %93 = vmatpush2.msra.mxu0 0.0
  %94 = vmatprep.subr.mxu0 0.0
  %95 = vmatpush2.msra.mxu0 0.0
  %96 = vmatprep.subr.mxu0 0.0
  %97 = vmatpush2.msra.mxu0 0.0
  %98 = vmatprep.subr.mxu0 0.0
  %99 = vmatpush2.msra.mxu0 0.0
  %100 = vmatprep.subr.mxu0 0.0
  %101 = vmatpush2.msra.mxu0 0.0
  %102 = vmatprep.subr.mxu0 0.0
  %103 = vmatpush2.msra.mxu0 0.0
  %104 = vmatprep.subr.mxu0 0.0
  %105 = vmatpush2.msra.mxu0 0.0
  %106 = vmatprep.subr.mxu0 0.0
  %107 = vmatpush2.msra.mxu0 0.0
  %108 = vmatprep.subr.mxu0 0.0
  %109 = vmatpush2.msra.mxu0 0.0
  %110 = vmatprep.mubr.f32.mxu0 0.0
  %111 = vmatmul.mubr.f32.gmra.mxu0 %v41
  %v112 = vpop.f32.mrf.mxu0
  %v113 = vadd.f32 %v37, %v112
  %v114 = vpop.f32.mrf.mxu0
  %115 = vmatprep.mubr.f32.mxu0 0.0
  %116 = vmatmul.mubr.f32.gmra.mxu0 %v44
  %v117 = vpop.f32.mrf.mxu0
  %v118 = vadd.f32 %v37, %v117
  %v119 = vpop.f32.mrf.mxu0
  %120 = vdwg.mxu0
  %v121 = vmax.f32 %v113, 0.0
  %v122 = vmax.f32 %v118, 0.0
  %v123 = vsel %vm39, %v121, -inf
  %v124 = vrot.slane %v123, 4
  %v125 = vmax.f32 %v123, %v124
  %v126 = vrot.slane %v125, 2
  %v127 = vmax.f32 %v125, %v126
  %v128 = vrot.slane %v127, 1
  %v129 = vmax.f32 %v127, %v128
  %v130 = vsel %vm39, %v122, -inf
  %v131 = vrot.slane %v130, 4
  %v132 = vmax.f32 %v130, %v131
  %v133 = vrot.slane %v132, 2
  %v134 = vmax.f32 %v132, %v133
  %v135 = vrot.slane %v134, 1
  %v136 = vmax.f32 %v134, %v135
  %v137 = vsel %vm39, %v121, 0.0
  %v138 = vrot.slane %v137, 4
  %v139 = vadd.f32 %v137, %v138
  %v140 = vrot.slane %v139, 2
  %v141 = vadd.f32 %v139, %v140
  %v142 = vrot.slane %v141, 1
  %v143 = vadd.f32 %v141, %v142
  %v144 = vsel %vm39, %v122, 0.0
  %v145 = vrot.slane %v144, 4
  %v146 = vadd.f32 %v144, %v145
  %v147 = vrot.slane %v146, 2
  %v148 = vadd.f32 %v146, %v147
  %v149 = vrot.slane %v148, 1
  %v150 = vadd.f32 %v148, %v149
  %v151 = vrcp.pop 8.0
  %v152 = vmul.f32 %v143, %v151
  %v153 = vmul.f32 %v150, %v151
  %vm156 = vcmask 1041409
  %v157 = vsel %vm156, %v136, %v129
  %v161 = vsel %vm156, %v153, %v152
  %162 = vrot.lane.b32.xlu0 %v161, 32
  %v163 = vpop.permute.xlu0 %162
  %v165 = vsel %vm39, %v157, %v163
  %v166 = vld [vmem:[%s3] sm:$0xff]
  %v167 = vld [vmem:[%s3 + $0x8] sm:$0xff]
  %v168 = vld [vmem:[%s3 + $0x10] sm:$0xff]
  %v169 = vld [vmem:[%s3 + $0x18] sm:$0xff]
  %v170 = vld [vmem:[%s3 + $0x20] sm:$0xff]
  %v171 = vld [vmem:[%s3 + $0x28] sm:$0xff]
  %v172 = vld [vmem:[%s3 + $0x30] sm:$0xff]
  %v173 = vld [vmem:[%s3 + $0x38] sm:$0xff]
  %v174 = vld [vmem:[%s4] sm:$0x1]
  %v176 = vlaneseq
  %v177 = vshrl.u32 %v176, 7
  %v178 = vsub.s32 0, %v177
  %v179 = vrot.slane %v174, %v178
  %vm181 = vcmask 523264
  %v183 = vsel %vm181, %v165, 0
  %185 = vmatprep.subr.mxu0 0.0
  %186 = vmatpush1.msra.mxu0 0.0
  %187 = vmatprep.subr.mxu0 0.0
  %188 = vmatpush1.msra.mxu0 0.0
  %189 = vmatprep.subr.mxu0 0.0
  %190 = vmatpush1.msra.mxu0 0.0
  %191 = vmatprep.subr.mxu0 0.0
  %192 = vmatpush1.msra.mxu0 0.0
  %193 = vmatprep.subr.mxu0 0.0
  %194 = vmatpush1.msra.mxu0 0.0
  %195 = vmatprep.subr.mxu0 0.0
  %196 = vmatpush1.msra.mxu0 0.0
  %197 = vmatprep.subr.mxu0 0.0
  %198 = vmatpush1.msra.mxu0 0.0
  %199 = vmatprep.subr.mxu0 0.0
  %200 = vmatpush1.msra.mxu0 0.0
  %201 = vmatprep.subr.mxu0 0.0
  %202 = vmatpush1.msra.mxu0 %v173
  %203 = vmatprep.subr.mxu0 0.0
  %204 = vmatpush1.msra.mxu0 %v172
  %205 = vmatprep.subr.mxu0 0.0
  %206 = vmatpush1.msra.mxu0 %v171
  %207 = vmatprep.subr.mxu0 0.0
  %208 = vmatpush1.msra.mxu0 %v170
  %209 = vmatprep.subr.mxu0 0.0
  %210 = vmatpush1.msra.mxu0 %v169
  %211 = vmatprep.subr.mxu0 0.0
  %212 = vmatpush1.msra.mxu0 %v168
  %213 = vmatprep.subr.mxu0 0.0
  %214 = vmatpush1.msra.mxu0 %v167
  %215 = vmatprep.subr.mxu0 0.0
  %216 = vmatpush1.msra.mxu0 %v166
  %217 = vmatprep.subr.mxu0 0.0
  %218 = vmatpush2.msra.mxu0 0.0
  %219 = vmatprep.subr.mxu0 0.0
  %220 = vmatpush2.msra.mxu0 0.0
  %221 = vmatprep.subr.mxu0 0.0
  %222 = vmatpush2.msra.mxu0 0.0
  %223 = vmatprep.subr.mxu0 0.0
  %224 = vmatpush2.msra.mxu0 0.0
  %225 = vmatprep.subr.mxu0 0.0
  %226 = vmatpush2.msra.mxu0 0.0
  %227 = vmatprep.subr.mxu0 0.0
  %228 = vmatpush2.msra.mxu0 0.0
  %229 = vmatprep.subr.mxu0 0.0
  %230 = vmatpush2.msra.mxu0 0.0
  %231 = vmatprep.subr.mxu0 0.0
  %232 = vmatpush2.msra.mxu0 0.0
  %233 = vmatprep.subr.mxu0 0.0
  %234 = vmatpush2.msra.mxu0 0.0
  %235 = vmatprep.subr.mxu0 0.0
  %236 = vmatpush2.msra.mxu0 0.0
  %237 = vmatprep.subr.mxu0 0.0
  %238 = vmatpush2.msra.mxu0 0.0
  %239 = vmatprep.subr.mxu0 0.0
  %240 = vmatpush2.msra.mxu0 0.0
  %241 = vmatprep.subr.mxu0 0.0
  %242 = vmatpush2.msra.mxu0 0.0
  %243 = vmatprep.subr.mxu0 0.0
  %244 = vmatpush2.msra.mxu0 0.0
  %245 = vmatprep.subr.mxu0 0.0
  %246 = vmatpush2.msra.mxu0 0.0
  %247 = vmatprep.subr.mxu0 0.0
  %248 = vmatpush2.msra.mxu0 0.0
  %249 = vmatprep.mubr.f32.mxu0 0.0
  %250 = vmatmul.mubr.f32.gmra.mxu0 %v183
  %v251 = vpop.f32.mrf.mxu0
  %v252 = vadd.f32 %v179, %v251
  %v253 = vpop.f32.mrf.mxu0
  %254 = vdwg.mxu0
  %v255 = vmax.f32 %v252, 0.0
  %v256 = vld [vmem:[%s5] sm:$0xff]
  %v257 = vld [vmem:[%s5 + $0x8] sm:$0xff]
  %v258 = vld [vmem:[%s5 + $0x10] sm:$0xff]
  %v259 = vld [vmem:[%s5 + $0x18] sm:$0xff]
  %v260 = vld [vmem:[%s6] sm:$0x1]
  %v262 = vlaneseq
  %v263 = vshrl.u32 %v262, 7
  %v264 = vsub.s32 0, %v263
  %v265 = vrot.slane %v260, %v264
  %v268 = vsel %vm39, %v255, 0
  %270 = vmatprep.subr.mxu0 0.0
  %271 = vmatpush1.msra.mxu0 0.0
  %272 = vmatprep.subr.mxu0 0.0
  %273 = vmatpush1.msra.mxu0 0.0
  %274 = vmatprep.subr.mxu0 0.0
  %275 = vmatpush1.msra.mxu0 0.0
  %276 = vmatprep.subr.mxu0 0.0
  %277 = vmatpush1.msra.mxu0 0.0
  %278 = vmatprep.subr.mxu0 0.0
  %279 = vmatpush1.msra.mxu0 0.0
  %280 = vmatprep.subr.mxu0 0.0
  %281 = vmatpush1.msra.mxu0 0.0
  %282 = vmatprep.subr.mxu0 0.0
  %283 = vmatpush1.msra.mxu0 0.0
  %284 = vmatprep.subr.mxu0 0.0
  %285 = vmatpush1.msra.mxu0 0.0
  %286 = vmatprep.subr.mxu0 0.0
  %287 = vmatpush1.msra.mxu0 0.0
  %288 = vmatprep.subr.mxu0 0.0
  %289 = vmatpush1.msra.mxu0 0.0
  %290 = vmatprep.subr.mxu0 0.0
  %291 = vmatpush1.msra.mxu0 0.0
  %292 = vmatprep.subr.mxu0 0.0
  %293 = vmatpush1.msra.mxu0 0.0
  %294 = vmatprep.subr.mxu0 0.0
  %295 = vmatpush1.msra.mxu0 %v259
  %296 = vmatprep.subr.mxu0 0.0
  %297 = vmatpush1.msra.mxu0 %v258
  %298 = vmatprep.subr.mxu0 0.0
  %299 = vmatpush1.msra.mxu0 %v257
  %300 = vmatprep.subr.mxu0 0.0
  %301 = vmatpush1.msra.mxu0 %v256
  %302 = vmatprep.subr.mxu0 0.0
  %303 = vmatpush2.msra.mxu0 0.0
  %304 = vmatprep.subr.mxu0 0.0
  %305 = vmatpush2.msra.mxu0 0.0
  %306 = vmatprep.subr.mxu0 0.0
  %307 = vmatpush2.msra.mxu0 0.0
  %308 = vmatprep.subr.mxu0 0.0
  %309 = vmatpush2.msra.mxu0 0.0
  %310 = vmatprep.subr.mxu0 0.0
  %311 = vmatpush2.msra.mxu0 0.0
  %312 = vmatprep.subr.mxu0 0.0
  %313 = vmatpush2.msra.mxu0 0.0
  %314 = vmatprep.subr.mxu0 0.0
  %315 = vmatpush2.msra.mxu0 0.0
  %316 = vmatprep.subr.mxu0 0.0
  %317 = vmatpush2.msra.mxu0 0.0
  %318 = vmatprep.subr.mxu0 0.0
  %319 = vmatpush2.msra.mxu0 0.0
  %320 = vmatprep.subr.mxu0 0.0
  %321 = vmatpush2.msra.mxu0 0.0
  %322 = vmatprep.subr.mxu0 0.0
  %323 = vmatpush2.msra.mxu0 0.0
  %324 = vmatprep.subr.mxu0 0.0
  %325 = vmatpush2.msra.mxu0 0.0
  %326 = vmatprep.subr.mxu0 0.0
  %327 = vmatpush2.msra.mxu0 0.0
  %328 = vmatprep.subr.mxu0 0.0
  %329 = vmatpush2.msra.mxu0 0.0
  %330 = vmatprep.subr.mxu0 0.0
  %331 = vmatpush2.msra.mxu0 0.0
  %332 = vmatprep.subr.mxu0 0.0
  %333 = vmatpush2.msra.mxu0 0.0
  %334 = vmatprep.mubr.f32.mxu0 0.0
  %335 = vmatmul.mubr.f32.gmra.mxu0 %v268
  %v336 = vpop.f32.mrf.mxu0
  %v337 = vadd.f32 %v265, %v336
  %v338 = vpop.f32.mrf.mxu0
  %339 = vdwg.mxu0
  %341 = vrot.lane.b32.xlu0 %v337, 112
  %v342 = vpop.permute.xlu0 %341
  %v344 = vmax.f32 %v337, %v342
  %345 = vrot.lane.b32.xlu0 %v337, 96
  %v346 = vpop.permute.xlu0 %345
  %v348 = vmax.f32 %v344, %v346
  %v349 = vsub.f32 %v337, %v348
  %v350 = vmul.f32 %v349, 1.442695
  %v351 = vpow.pop %v350
  %353 = vrot.lane.b32.xlu0 %v348, 16
  %v354 = vpop.permute.xlu0 %353
  %v356 = vsub.f32 %v337, %v354
  %v357 = vmul.f32 %v356, 1.442695
  %v358 = vpow.pop %v357
  %359 = vrot.lane.b32.xlu0 %v348, 32
  %v360 = vpop.permute.xlu0 %359
  %v362 = vsub.f32 %v337, %v360
  %v363 = vmul.f32 %v362, 1.442695
  %v364 = vpow.pop %v363
  %366 = vrot.lane.b32.xlu0 %v358, 112
  %v367 = vpop.permute.xlu0 %366
  %v369 = vadd.f32 %v351, %v367
  %371 = vrot.lane.b32.xlu0 %v364, 96
  %v372 = vpop.permute.xlu0 %371
  %v374 = vadd.f32 %v369, %v372
  %v375 = vrcp.pop %v374
  %v376 = vmul.f32 %v351, %v375
  %378 = vrot.lane.b32.xlu0 %v376, 48
  %v379 = vpop.permute.xlu0 %378
  %v381 = vmul.f32 %v337, %v379
  %383 = vrot.lane.b32.xlu0 %v375, 16
  %v384 = vpop.permute.xlu0 %383
  %v386 = vmul.f32 %v358, %v384
  %388 = vrot.lane.b32.xlu0 %v386, 48
  %v389 = vpop.permute.xlu0 %388
  %v391 = vmul.f32 %v337, %v389
  %393 = vrot.lane.b32.xlu0 %v391, 112
  %v394 = vpop.permute.xlu0 %393
  %v396 = vadd.f32 %v381, %v394
  %398 = vrot.lane.b32.xlu0 %v396, 80
  %v399 = vpop.permute.xlu0 %398
  %vm401 = vcmask 130048
  %v402 = vsel %vm401, %v399, 0.0
  %vm403 = vcmask 1041408
  %v404 = vsel %vm403, %v402, 0.0
  %405 = vst [vmem:[%s7] sm:$0xff] %v404
  // Predicated region
  $region30: #{gated_dbof_forward.1} parent=0 // pred_check
    _
  $region31: #{gated_dbof_forward.1} parent=0 // pred_check_branch
    %407 = sbr.rel (0) target = $region33
  $region32: #{gated_dbof_forward.1} parent=0 // pred_region
    _
  $region33: #{gated_dbof_forward.1} parent=0 // pred_fallthru
    _
  // Predicated region
  $region34: #{gated_dbof_forward.1} parent=0 // pred_check
    _
  $region35: #{gated_dbof_forward.1} parent=0 // pred_check_branch
    %409 = sbr.rel (0) target = $region37
  $region36: #{gated_dbof_forward.1} parent=0 // pred_region
    _
  $region37: #{gated_dbof_forward.1} parent=0 // pred_fallthru
    _

</llo_original>
